<compile_context>
chip_gen: v7x
topology: tpu7x:2x2x1
jax: 0.10.0
libtpu: 0.0.40
codegen_flags: <defaults>
</compile_context>

<pallas_src>
import functools

import jax
import jax.numpy as jnp
from jax.experimental import pallas as pl
from jax.experimental.pallas import tpu as pltpu

LANES = 128
SUBLANES = 8


def _round_up(a, b):
    return ((a + b - 1) // b) * b


def _device_kind():
    try:
        return jax.devices()[0].device_kind.lower()
    except Exception:
        return ""


def _focal_loss_kernel(x_ref, t_ref, out_ref, *, gamma, alpha, n_valid,
                       tile_rows, steps, needs_mask, precise):
    p_id = pl.program_id(0)          # "parallel" (core) axis
    i = pl.program_id(1)             # reduction axis

    @pl.when(i == 0)
    def _init():
        out_ref[...] = jnp.zeros_like(out_ref)

    x = x_ref[...].astype(jnp.float32)
    t = t_ref[...].astype(jnp.float32)

    # Share exp(-|x|) between sigmoid and the stable BCE-with-logits.
    ax = jnp.abs(x)
    e = jnp.exp(-ax)
    d = 1.0 + e
    inv = pl.reciprocal(d, approx=True)          # single EUP rcp
    if precise:
        inv = inv * (2.0 - d * inv)              # 1 Newton step (free when HBM-bound)
    p = jnp.where(x >= 0.0, inv, e * inv)        # sigmoid(x)
    ce = jnp.maximum(x, 0.0) - x * t + jnp.log(d)  # BCE with logits (reuses d)

    # focal modulation: omp == 1 - p_t
    omp = p + t - 2.0 * p * t
    if gamma == 2.0:
        mod = omp * omp                          # strength-reduced default
    elif gamma == 1.0:
        mod = omp
    elif gamma == 0.0:
        mod = None
    else:
        mod = jnp.power(jnp.maximum(omp, 0.0), gamma)
    loss = ce if mod is None else ce * mod
    if alpha >= 0:
        # alpha_t = alpha*t + (1-alpha)*(1-t) == (1-alpha) + (2*alpha-1)*t
        loss = ((1.0 - alpha) + (2.0 * alpha - 1.0) * t) * loss

    def _accum(v):
        # Vreg-shaped accumulation: pure VPU adds; cross-lane reduce happens
        # once in the wrapper.
        out_ref[0] += jnp.sum(
            v.reshape(tile_rows // SUBLANES, SUBLANES, LANES), axis=0)

    if needs_mask:
        # Row-based indices (no int32 overflow even for multi-billion elems).
        full = n_valid // LANES          # static: number of fully-valid rows
        rem = n_valid % LANES            # static: valid lanes in partial row
        row0 = (p_id * steps + i) * tile_rows
        blk_needs_mask = row0 + tile_rows > full

        @pl.when(blk_needs_mask)
        def _masked():
            grow = row0 + jax.lax.broadcasted_iota(jnp.int32, loss.shape, 0)
            if rem:
                lane = jax.lax.broadcasted_iota(jnp.int32, loss.shape, 1)
                m = (grow < full) | ((grow == full) & (lane < rem))
            else:
                m = grow < full
            _accum(jnp.where(m, loss, 0.0))

        @pl.when(jnp.logical_not(blk_needs_mask))
        def _unmasked():
            _accum(loss)
    else:
        _accum(loss)


def sigmoid_focal_with_logits_loss(logits, targets, *, reduction="mean",
                                   gamma=2.0, alpha=0.25):
    assert logits.shape == targets.shape
    n_elems = int(logits.size)
    if n_elems == 0:
        return jnp.zeros((), jnp.float32)

    if reduction == "mean":
        scale = 1.0 / float(n_elems)
    elif reduction == "sum":
        scale = 1.0
    else:
        # TODO(synk): reduction='none' would need a full-size elementwise
        # output slab; only 'mean' and 'sum' are supported by this kernel.
        raise NotImplementedError(f"reduction={reduction!r}")

    # Flatten in native dtype (cast happens inside the kernel).
    x = jnp.ravel(logits)
    t = jnp.ravel(targets)

    if n_elems % LANES == 0:
        rows = n_elems // LANES          # zero-copy fast path (reshape is free)
    else:
        # Uncommon misaligned case: tiny lane-tail pad (rows also rounded to a
        # sublane multiple since we are copying anyway).
        rows = _round_up(pl.cdiv(n_elems, LANES), SUBLANES)
        pad = rows * LANES - n_elems
        x = jnp.pad(x, (0, pad))
        t = jnp.pad(t, (0, pad))
    x = x.reshape(rows, LANES)
    t = t.reshape(rows, LANES)

    kind = _device_kind()
    is_v7 = "v7" in kind
    # 2-way split only where there really are 2 TensorCores (v7x).
    n_cores = 2 if (is_v7 and rows >= 2 * SUBLANES) else 1
    cap = 8192 if is_v7 else 4096        # rows per block (2-4 MiB/input @ f32)

    per_core = pl.cdiv(rows, n_cores)
    tile_rows = min(cap, _round_up(per_core, SUBLANES))
    steps = pl.cdiv(per_core, tile_rows)
    # Rebalance so the per-core blocks are as even as possible (avoids large
    # overshoot past the end of the array).
    tile_rows = min(tile_rows, _round_up(pl.cdiv(per_core, steps), SUBLANES))
    n_blocks = n_cores * steps
    last_blk = max(pl.cdiv(rows, tile_rows) - 1, 0)
    needs_mask = (n_blocks * tile_rows * LANES) != n_elems

    # Newton refinement only when inputs are 4-byte (kernel is HBM-bound and
    # the extra VPU ops are free); dropped for narrow dtypes.
    precise = jnp.dtype(logits.dtype).itemsize >= 4

    kernel = functools.partial(
        _focal_loss_kernel, gamma=float(gamma), alpha=float(alpha),
        n_valid=n_elems, tile_rows=int(tile_rows), steps=int(steps),
        needs_mask=bool(needs_mask), precise=bool(precise))

    if (n_blocks - 1) * tile_rows >= rows:
        # Some trailing blocks would start past the array (only possible with
        # the 2-core split); clamp them onto the last real block — the mask
        # zeroes their contribution.
        def in_map(p, i):
            return (jnp.minimum(p * steps + i, last_blk), 0)
    else:
        def in_map(p, i):
            return (p * steps + i, 0)
    in_block = pl.BlockSpec((tile_rows, LANES), in_map)

    in_bytes = tile_rows * LANES * (jnp.dtype(logits.dtype).itemsize +
                                    jnp.dtype(targets.dtype).itemsize)
    # Double-buffered inputs + headroom; safe on every generation's VMEM.
    vmem_limit = max(16 << 20, min(40 << 20, 2 * in_bytes + (4 << 20)))

    partials = pl.pallas_call(
        kernel,
        out_shape=jax.ShapeDtypeStruct((n_cores, SUBLANES, LANES), jnp.float32),
        grid_spec=pltpu.PrefetchScalarGridSpec(
            num_scalar_prefetch=0,
            grid=(n_cores, steps),
            in_specs=[in_block, in_block],
            out_specs=pl.BlockSpec((1, SUBLANES, LANES),
                                   lambda p, i: (p, 0, 0)),
        ),
        compiler_params=pltpu.CompilerParams(
            # TODO(synk): on v7x verify "parallel" actually shards the leading
            # axis across the 2 TensorCores; if not, switch to CORE_PARALLEL.
            dimension_semantics=("parallel", "arbitrary"),
            vmem_limit_bytes=int(vmem_limit)),
    )(x, t)

    return jnp.sum(partials) * scale


def _reference(logits, targets, gamma=2.0, alpha=0.25, reduction="mean"):
    x = logits.astype(jnp.float32)
    t = targets.astype(jnp.float32)
    p = jax.nn.sigmoid(x)
    ce = jnp.maximum(x, 0.0) - x * t + jnp.log1p(jnp.exp(-jnp.abs(x)))
    p_t = p * t + (1.0 - p) * (1.0 - t)
    loss = ce * (1.0 - p_t) ** gamma
    alpha_t = alpha * t + (1.0 - alpha) * (1.0 - t)
    loss = alpha_t * loss
    return jnp.mean(loss) if reduction == "mean" else jnp.sum(loss)


if __name__ == "__main__":
    key = jax.random.PRNGKey(0)
    k1, k2, k3, k4 = jax.random.split(key, 4)

    # Case 1: detection-head-like shape (B, C, H, W), 128-aligned element
    # count -> zero-copy, statically unmasked fast path, 'mean' reduction.
    shape1 = (2, 4, 16, 16)
    logits1 = jax.random.normal(k1, shape1, dtype=jnp.float32) * 2.0
    targets1 = (jax.random.uniform(k2, shape1) > 0.8).astype(jnp.float32)
    out1 = jax.block_until_ready(
        sigmoid_focal_with_logits_loss(logits1, targets1, reduction="mean"))
    ref1 = jax.block_until_ready(_reference(logits1, targets1, reduction="mean"))
    assert jnp.allclose(out1, ref1, rtol=1e-3, atol=1e-6), (out1, ref1)

    # Case 2: odd element count -> tiny tail pad + last-block mask path,
    # 'sum' reduction.
    shape2 = (3, 20, 7, 9)
    logits2 = jax.random.normal(k3, shape2, dtype=jnp.float32) * 2.0
    targets2 = (jax.random.uniform(k4, shape2) > 0.8).astype(jnp.float32)
    out2 = jax.block_until_ready(
        sigmoid_focal_with_logits_loss(logits2, targets2, reduction="sum"))
    ref2 = jax.block_until_ready(_reference(logits2, targets2, reduction="sum"))
    assert jnp.allclose(out2, ref2, rtol=1e-3, atol=1e-4), (out2, ref2)

    print("KERNEL_OK")
</pallas_src>

<mosaic_0001>
module attributes {stable_mosaic.version = 11 : i64} {
  func.func @_focal_loss_kernel(%arg0: i32, %arg1: i32, %arg2: memref<16x128xf32, #tpu.memory_space<vmem>>, %arg3: memref<16x128xf32, #tpu.memory_space<vmem>>, %arg4: memref<1x8x128xf32, #tpu.memory_space<vmem>>) attributes {dimension_semantics = [#tpu.dimension_semantics<parallel>, #tpu.dimension_semantics<arbitrary>], iteration_bounds = array<i64: 1, 1>, scalar_prefetch = 0 : i64, scratch_operands = 0 : i64, tpu.core_type = #tpu.core_type<tc>, window_params = [{transform_indices = @transform_0, window_bounds = array<i64: 16, 128>}, {transform_indices = @transform_1, window_bounds = array<i64: 16, 128>}, {transform_indices = @transform_2, window_bounds = array<i64: 1, 8, 128>}]} {
    %c0_i32 = arith.constant 0 : i32
    %0 = arith.cmpi eq, %arg1, %c0_i32 : i32
    %1 = arith.extui %0 : i1 to i32
    %c0_i32_0 = arith.constant 0 : i32
    %2 = arith.cmpi ne, %1, %c0_i32_0 : i32
    scf.if %2 {
      %cst_18 = arith.constant 0.000000e+00 : f32
      %46 = vector.broadcast %cst_18 : f32 to vector<1x8x128xf32>
      %c0_19 = arith.constant 0 : index
      %c0_20 = arith.constant 0 : index
      %c0_21 = arith.constant 0 : index
      %47 = vector.load %arg4[%c0_19, %c0_20, %c0_21] : memref<1x8x128xf32, #tpu.memory_space<vmem>>, vector<1x8x128xf32>
      tpu.vector_store %arg4[%c0_19, %c0_20, %c0_21], %46 {strides = array<i32>} : memref<1x8x128xf32, #tpu.memory_space<vmem>>, vector<1x8x128xf32>,
    } else {
    }
    %c0 = arith.constant 0 : index
    %c0_1 = arith.constant 0 : index
    %3 = vector.load %arg2[%c0, %c0_1] : memref<16x128xf32, #tpu.memory_space<vmem>>, vector<16x128xf32>
    %c0_2 = arith.constant 0 : index
    %c0_3 = arith.constant 0 : index
    %4 = vector.load %arg3[%c0_2, %c0_3] : memref<16x128xf32, #tpu.memory_space<vmem>>, vector<16x128xf32>
    %5 = math.absf %3 : vector<16x128xf32>
    %cst = arith.constant 0.000000e+00 : f32
    %6 = vector.broadcast %cst : f32 to vector<16x128xf32>
    %7 = arith.subf %6, %5 : vector<16x128xf32>
    %8 = math.exp %7 : vector<16x128xf32>
    %cst_4 = arith.constant 1.000000e+00 : f32
    %9 = vector.broadcast %cst_4 : f32 to vector<16x128xf32>
    %10 = arith.addf %9, %8 : vector<16x128xf32>
    %11 = tpu.reciprocal %10 {approx = true} : vector<16x128xf32> -> vector<16x128xf32>
    %12 = arith.mulf %10, %11 : vector<16x128xf32>
    %cst_5 = arith.constant 2.000000e+00 : f32
    %13 = vector.broadcast %cst_5 : f32 to vector<16x128xf32>
    %14 = arith.subf %13, %12 : vector<16x128xf32>
    %15 = arith.mulf %11, %14 : vector<16x128xf32>
    %cst_6 = arith.constant 0.000000e+00 : f32
    %16 = vector.broadcast %cst_6 : f32 to vector<16x128xf32>
    %17 = arith.cmpf oge, %3, %16 : vector<16x128xf32>
    %18 = arith.mulf %8, %15 : vector<16x128xf32>
    %19 = arith.select %17, %15, %18 : vector<16x128xi1>, vector<16x128xf32>
    %cst_7 = arith.constant 0.000000e+00 : f32
    %20 = vector.broadcast %cst_7 : f32 to vector<16x128xf32>
    %21 = arith.maximumf %3, %20 : vector<16x128xf32>
    %22 = arith.mulf %3, %4 : vector<16x128xf32>
    %23 = arith.subf %21, %22 : vector<16x128xf32>
    %24 = math.log %10 : vector<16x128xf32>
    %25 = arith.addf %23, %24 : vector<16x128xf32>
    %26 = arith.addf %19, %4 : vector<16x128xf32>
    %cst_8 = arith.constant 2.000000e+00 : f32
    %27 = vector.broadcast %cst_8 : f32 to vector<16x128xf32>
    %28 = arith.mulf %27, %19 : vector<16x128xf32>
    %29 = arith.mulf %28, %4 : vector<16x128xf32>
    %30 = arith.subf %26, %29 : vector<16x128xf32>
    %31 = arith.mulf %30, %30 : vector<16x128xf32>
    %32 = arith.mulf %25, %31 : vector<16x128xf32>
    %cst_9 = arith.constant -5.000000e-01 : f32
    %33 = vector.broadcast %cst_9 : f32 to vector<16x128xf32>
    %34 = arith.mulf %33, %4 : vector<16x128xf32>
    %cst_10 = arith.constant 7.500000e-01 : f32
    %35 = vector.broadcast %cst_10 : f32 to vector<16x128xf32>
    %36 = arith.addf %35, %34 : vector<16x128xf32>
    %37 = arith.mulf %36, %32 : vector<16x128xf32>
    %c0_11 = arith.constant 0 : index
    %c0_12 = arith.constant 0 : index
    %c0_13 = arith.constant 0 : index
    %38 = vector.load %arg4[%c0_11, %c0_12, %c0_13] : memref<1x8x128xf32, #tpu.memory_space<vmem>>, vector<1x8x128xf32>
    %39 = vector.shape_cast %38 : vector<1x8x128xf32> to vector<8x128xf32>
    %40 = vector.shape_cast %37 : vector<16x128xf32> to vector<2x8x128xf32>
    %cst_14 = arith.constant dense<0.000000e+00> : vector<8x128xf32>
    %41 = vector.multi_reduction <add>, %40, %cst_14 [0] : vector<2x8x128xf32> to vector<8x128xf32>
    %42 = arith.addf %39, %41 : vector<8x128xf32>
    %c0_15 = arith.constant 0 : index
    %c0_16 = arith.constant 0 : index
    %c0_17 = arith.constant 0 : index
    %43 = vector.load %arg4[%c0_15, %c0_16, %c0_17] : memref<1x8x128xf32, #tpu.memory_space<vmem>>, vector<1x8x128xf32>
    %44 = vector.shape_cast %43 : vector<1x8x128xf32> to vector<8x128xf32>
    %45 = vector.shape_cast %42 : vector<8x128xf32> to vector<1x8x128xf32>
    tpu.vector_store %arg4[%c0_15, %c0_16, %c0_17], %45 {strides = array<i32>} : memref<1x8x128xf32, #tpu.memory_space<vmem>>, vector<1x8x128xf32>,
    return
  }
  func.func @transform_0(%arg0: i32, %arg1: i32) -> (i32, i32) {
    %c1_i32 = arith.constant 1 : i32
    %0 = arith.muli %arg0, %c1_i32 : i32
    %1 = arith.addi %0, %arg1 : i32
    %c0_i32 = arith.constant 0 : i32
    %c0_i32_0 = arith.constant 0 : i32
    return %1, %c0_i32 : i32, i32
  }
  func.func @transform_1(%arg0: i32, %arg1: i32) -> (i32, i32) {
    %c1_i32 = arith.constant 1 : i32
    %0 = arith.muli %arg0, %c1_i32 : i32
    %1 = arith.addi %0, %arg1 : i32
    %c0_i32 = arith.constant 0 : i32
    %c0_i32_0 = arith.constant 0 : i32
    return %1, %c0_i32 : i32, i32
  }
  func.func @transform_2(%arg0: i32, %arg1: i32) -> (i32, i32, i32) {
    %c0_i32 = arith.constant 0 : i32
    %c0_i32_0 = arith.constant 0 : i32
    %c0_i32_1 = arith.constant 0 : i32
    return %arg0, %c0_i32, %c0_i32_0 : i32, i32, i32
  }
}

</mosaic_0001>

<llo_original>
// kernel: tpu_custom_call.1
$region0: #{tpu_custom_call.1}
  #allocation0 [shape = 'u32[]', space=smem, size = 0x4, offset = 0x4, fixed_abs, tag = 'smem constant byte address 0x4 - core index']
  #allocation1 [shape = 'u32[144,128]{1,0:T(1,128)}', space=vmem, size = 0x12000, scoped, tag = 'internal scratch']
  %s0 = inlined_call_operand.hbm [shape: f32[16,128], index: 0, kind: input, shape index: {}]
  %s1 = inlined_call_operand.hbm [shape: f32[16,128], index: 1, kind: input, shape index: {}]
  %s2 = inlined_call_operand.hbm [shape: f32[1,8,128], index: 2, kind: output, shape index: {}]
  %s3 = sld [smem:[#allocation0]]
  $region30: #{tpu_custom_call.1} parent=0
    _
  %s5 = ssub.s32 1, %s3
  %s6 = scalar_select 0, %s5, %s3
  $region1: #{tpu_custom_call.1} parent=0
    #allocation2 [shape = 'u8[8192]{0}', space=vmem, size = 0x2000, scoped, tag = 'input window, operand 0, single buffered']
    #allocation3 [shape = 's32[1]{0}', space=sflag, size = 0x4, scoped, tag = 'scoped memory for tpu_custom_call.1']
    #allocation4 [shape = 's32[1]{0}', space=sflag, size = 0x4, scoped, tag = 'scoped memory for tpu_custom_call.1']
    #allocation5 [shape = 'u8[8192]{0}', space=vmem, size = 0x2000, scoped, tag = 'input window, operand 1, single buffered']
    #allocation6 [shape = 's32[1]{0}', space=sflag, size = 0x4, scoped, tag = 'scoped memory for tpu_custom_call.1']
    #allocation7 [shape = 'u8[4096]{0}', space=vmem, size = 0x1000, scoped, tag = 'output window, operand 0, single buffered']
    %7 = vsyncpa [#allocation3], 0
    %8 = vsyncpa [#allocation6], 0
    %9 = vsyncpa [#allocation4], 0
    // Predicated region
    $region2: #{tpu_custom_call.1} parent=1 // pred_check
      _
    $region3: #{tpu_custom_call.1} parent=1 // pred_check_branch
      %11 = sbr.rel (0) target = $region5
    $region4: #{tpu_custom_call.1} parent=1 // pred_region
      %s12 = sadd.s32 0, 0
      %s13 = smul.u32 2, %s12
      %s15 = ssub.s32 256, 256
      %16 = vsyncadd [#allocation3], %s15
      %s17 = smul.addr %s13, 128
      %s18 = scalar_lea.hbm %s0, %s17
      %s19 = sshll.u32 [#allocation2], 4
      %s20 = int_to_ptr.vmem [resolvable:$true] %s19
      %25 = dma.hbm_to_vmem [thread:$0]  %s18, 256, %s20, [#allocation3], 128, 128, 8
    $region5: #{tpu_custom_call.1} parent=1 // pred_fallthru
      _
    // Predicated region
    $region6: #{tpu_custom_call.1} parent=1 // pred_check
      _
    $region7: #{tpu_custom_call.1} parent=1 // pred_check_branch
      %27 = sbr.rel (0) target = $region9
    $region8: #{tpu_custom_call.1} parent=1 // pred_region
      %s28 = sadd.s32 0, 0
      %s29 = smul.u32 2, %s28
      %s31 = ssub.s32 256, 256
      %32 = vsyncadd [#allocation6], %s31
      %s33 = smul.addr %s29, 128
      %s34 = scalar_lea.hbm %s1, %s33
      %s35 = sshll.u32 [#allocation5], 4
      %s36 = int_to_ptr.vmem [resolvable:$true] %s35
      %41 = dma.hbm_to_vmem [thread:$0]  %s34, 256, %s36, [#allocation6], 128, 128, 8
    $region9: #{tpu_custom_call.1} parent=1 // pred_fallthru
      _
    // Predicated region
    $region10: #{tpu_custom_call.1} parent=1 // pred_check
      _
    $region11: #{tpu_custom_call.1} parent=1 // pred_check_branch
      %43 = sbr.rel (0) target = $region13
    $region12: #{tpu_custom_call.1} parent=1 // pred_region
      %44 = dma.done [#allocation3], 256
    $region13: #{tpu_custom_call.1} parent=1 // pred_fallthru
      _
    // Predicated region
    $region14: #{tpu_custom_call.1} parent=1 // pred_check
      _
    $region15: #{tpu_custom_call.1} parent=1 // pred_check_branch
      %46 = sbr.rel (0) target = $region17
    $region16: #{tpu_custom_call.1} parent=1 // pred_region
      %47 = dma.done [#allocation6], 256
    $region17: #{tpu_custom_call.1} parent=1 // pred_fallthru
      _
    %s48 = sadd.s32 0, 0
    %s49 = smul.u32 2, %s48
    %s50 = sadd.s32 0, 0
    %s51 = smul.u32 2, %s50
    %p52 = scmp.eq.s32.totalorder 0, 0
    // Predicated region
    $region18: #{tpu_custom_call.1} parent=1 // pred_check
      %p53 = pneg %p52
    $region19: #{tpu_custom_call.1} parent=1 // pred_check_branch
      %55 = sbr.rel (%p53) target = $region21
    $region20: #{tpu_custom_call.1} parent=1 // pred_region
      %56 = vst [vmem:[#allocation7] sm:$0xff] 0.0
    $region21: #{tpu_custom_call.1} parent=1 // pred_fallthru
      _
    %v57 = vld [vmem:[#allocation2] sm:$0xff]
    %v58 = vld [vmem:[#allocation2 + $0x8] sm:$0xff]
    %v59 = vld [vmem:[#allocation5] sm:$0xff]
    %v60 = vld [vmem:[#allocation5 + $0x8] sm:$0xff]
    %v61 = vand.u32 2147483647, %v57
    %v62 = vand.u32 2147483647, %v58
    %v63 = vsub.f32 0.0, %v61
    %v64 = vsub.f32 0.0, %v62
    %v65 = vmul.f32 %v63, 1.442695
    %v66 = vpow.pop %v65
    %v67 = vmul.f32 %v64, 1.442695
    %v68 = vpow.pop %v67
    %v69 = vadd.f32 %v66, 1.0
    %v70 = vadd.f32 %v68, 1.0
    %v71 = vrcp.pop %v69
    %v72 = vrcp.pop %v70
    %v73 = vmul.f32 %v69, %v71
    %v74 = vmul.f32 %v70, %v72
    %v75 = vsub.f32 2.0, %v73
    %v76 = vsub.f32 2.0, %v74
    %v77 = vmul.f32 %v71, %v75
    %v78 = vmul.f32 %v72, %v76
    %vm79 = vcmp.ge.f32.partialorder %v57, 0.0
    %vm80 = vcmp.ge.f32.partialorder %v58, 0.0
    %v81 = vmul.f32 %v66, %v77
    %v82 = vmul.f32 %v68, %v78
    %v83 = vsel %vm79, %v77, %v81
    %v84 = vsel %vm80, %v78, %v82
    %v85 = vmax.f32 %v57, 0.0
    %v86 = vmax.f32 %v58, 0.0
    %v87 = vmul.f32 %v57, %v59
    %v88 = vmul.f32 %v58, %v60
    %v89 = vsub.f32 %v85, %v87
    %v90 = vsub.f32 %v86, %v88
    %v91 = vlog2.pop %v69
    %v92 = vmul.f32 %v91, 0.6931472
    %v93 = vlog2.pop %v70
    %v94 = vmul.f32 %v93, 0.6931472
    %v95 = vadd.f32 %v89, %v92
    %v96 = vadd.f32 %v90, %v94
    %v97 = vadd.f32 %v83, %v59
    %v98 = vadd.f32 %v84, %v60
    %v99 = vmul.f32 %v83, 2.0
    %v100 = vmul.f32 %v84, 2.0
    %v101 = vmul.f32 %v99, %v59
    %v102 = vmul.f32 %v100, %v60
    %v103 = vsub.f32 %v97, %v101
    %v104 = vsub.f32 %v98, %v102
    %v105 = vmul.f32 %v103, %v103
    %v106 = vmul.f32 %v104, %v104
    %v107 = vmul.f32 %v95, %v105
    %v108 = vmul.f32 %v96, %v106
    %v109 = vmul.f32 %v59, -0.5
    %v110 = vmul.f32 %v60, -0.5
    %v111 = vadd.f32 %v109, 0.75
    %v112 = vadd.f32 %v110, 0.75
    %v113 = vmul.f32 %v111, %v107
    %v114 = vmul.f32 %v112, %v108
    %v115 = vld [vmem:[#allocation7] sm:$0xff]
    %v116 = vadd.f32 %v113, %v114
    %v117 = vadd.f32 %v115, %v116
    %118 = vst [vmem:[#allocation7] sm:$0xff] %v117
    // Predicated region
    $region22: #{tpu_custom_call.1} parent=1 // pred_check
      _
    $region23: #{tpu_custom_call.1} parent=1 // pred_check_branch
      %120 = sbr.rel (0) target = $region25
    $region24: #{tpu_custom_call.1} parent=1 // pred_region
      %s122 = ssub.s32 128, 128
      %123 = vsyncadd [#allocation4], %s122
      %s125 = sshll.u32 [#allocation7], 4
      %s126 = int_to_ptr.vmem [resolvable:$true] %s125
      %128 = dma.vmem_to_hbm [thread:$0]  %s126, 128, %s2, [#allocation4]
    $region25: #{tpu_custom_call.1} parent=1 // pred_fallthru
      _
    // Predicated region
    $region26: #{tpu_custom_call.1} parent=1 // pred_check
      _
    $region27: #{tpu_custom_call.1} parent=1 // pred_check_branch
      %130 = sbr.rel (0) target = $region29
    $region28: #{tpu_custom_call.1} parent=1 // pred_region
      %131 = dma.done [#allocation4], 128
    $region29: #{tpu_custom_call.1} parent=1 // pred_fallthru
      _
    %132 = vsyncpa [#allocation3], 1
    %133 = vsyncpa [#allocation6], 1
    %134 = vsyncpa [#allocation4], 1

</llo_original>
